<compile_context>
chip_gen: v6e
topology: v6e:2x2x1
jax: 0.10.0
libtpu: 0.0.40
codegen_flags: <defaults>
</compile_context>

<pallas_src>
import functools

import jax
import jax.numpy as jnp
from jax import lax
from jax.experimental import pallas as pl
from jax.experimental.pallas import tpu as pltpu


# ---------------------------------------------------------------------------
# Pass 1: conv (merged-tap, bf16 MXU) + bias, plus per-sample sum / sum-of-squares
#         accumulated across the row-tile ('arbitrary') grid axis.
# ---------------------------------------------------------------------------
def _conv_stats_kernel(x_ref, w_ref, b_ref, y_ref, stats_ref, *,
                       kh, kw, sh, sw, th, out_w):
    # x_ref:     (Cin, Hp, Wp)      replicate-padded sample (resident across row tiles)
    # w_ref:     (Cout, kh*kw*Cin)  merged-tap weight, bf16
    # b_ref:     (Cout, 1)          conv bias, f32
    # y_ref:     (Cout, TH*Wo)      conv+bias output tile (lane-dense), f32
    # stats_ref: (1, 2)             per-sample [sum, sum_sq], accumulated over tiles
    i = pl.program_id(1)
    kdim = w_ref.shape[1]

    row_step = th * sh
    row0 = i * row_step
    if row_step % 8 == 0:
        row0 = pl.multiple_of(row0, 8)

    # Gather the kh*kw shifted patches by slicing the Ref (only the halo window of
    # this row tile is loaded per tap), then merge all taps into one large-K matmul
    # operand of shape (kh*kw*Cin, TH*Wo).
    taps = []
    for ky in range(kh):
        rows = pl.ds(row0 + ky, th, sh) if sh > 1 else pl.ds(row0 + ky, th)
        for kx in range(kw):
            if sw == 1:
                p = x_ref[:, rows, pl.ds(kx, out_w)]
            else:
                span_w = (out_w - 1) * sw + 1
                p = x_ref[:, rows, pl.ds(kx, span_w)]
                p = p[:, :, ::sw]
            taps.append(p.astype(jnp.bfloat16))          # (Cin, TH, Wo)
    patch = jnp.concatenate(taps, axis=0)                 # (kh*kw*Cin, TH, Wo)
    patch = patch.reshape(kdim, th * out_w)               # (K, TH*Wo)  spatial on lanes

    # Transposed, lane-dense conv: (Cout, K) @ (K, TH*Wo), f32 accumulation on the MXU.
    y = jnp.dot(w_ref[...], patch, preferred_element_type=jnp.float32)
    y = y + b_ref[...]                                     # bias before GroupNorm stats
    y_ref[...] = y.astype(y_ref.dtype)

    # Single-pass GroupNorm statistics (f32): sum and sum of squares.
    part = jnp.concatenate([jnp.sum(y, keepdims=True),
                            jnp.sum(y * y, keepdims=True)], axis=1)   # (1, 2)

    @pl.when(i == 0)
    def _init():
        stats_ref[...] = jnp.zeros_like(stats_ref)

    stats_ref[...] += part


# ---------------------------------------------------------------------------
# Pass 2: lightweight elementwise finalize — folded GroupNorm affine + LeakyReLU.
# ---------------------------------------------------------------------------
def _gn_act_kernel(y_ref, ab_ref, o_ref, *, apply_activation, negative_slope):
    # y_ref:  (Cout, TH*Wo)  conv+bias tile, f32
    # ab_ref: (2, Cout, 1)   per-sample folded affine: a = gamma*rstd, b = beta - mean*a
    # o_ref:  (Cout, TH*Wo)
    y = y_ref[...].astype(jnp.float32)
    z = y * ab_ref[0] + ab_ref[1]
    if apply_activation:
        z = jnp.where(z >= 0, z, negative_slope * z)
    o_ref[...] = z.astype(o_ref.dtype)


def _pick_row_tile(out_h, out_w):
    """Pick a row-tile height TH (divisor of out_h) whose flattened width TH*out_w is a
    multiple of 128 (dense, unmasked stores), preferring the largest tile <= 2048 lanes.
    Falls back to the whole sample (block == full array dims) if no such divisor exists."""
    candidates = [t for t in range(1, out_h + 1)
                  if out_h % t == 0 and (t * out_w) % 128 == 0]
    if not candidates:
        return out_h
    within = [t for t in candidates if t * out_w <= 2048]
    return max(within) if within else min(candidates)


def conv_layer_pallas(x, weight, bias, gamma=None, beta=None, *, stride=1,
                      apply_norm=True, apply_activation=True, eps=1e-5,
                      negative_slope=0.02, row_tile=None):
    """Forward pass of ConvLayer.

    x:      [N, Cin, H, W]       (PyTorch NCHW layout, kept end-to-end)
    weight: [Cout, Cin, kh, kw]  (PyTorch OIHW layout)
    bias / gamma / beta: [Cout]
    Returns [N, Cout, Ho, Wo].
    """
    n, cin, h, w = x.shape
    cout, cin_w, kh, kw = weight.shape
    assert cin_w == cin
    sh, sw = (stride, stride) if isinstance(stride, int) else tuple(stride)
    ph, pw = kh // 2, kw // 2

    # Replicate padding (== PyTorch padding_mode='replicate').  Still one host-side HBM
    # pass; folding it into the kernel via clamped halo reads is the next perf step.
    xp = jnp.pad(x, ((0, 0), (0, 0), (ph, ph), (pw, pw)), mode="edge")
    hp, wp = h + 2 * ph, w + 2 * pw
    out_h = (hp - kh) // sh + 1
    out_w = (wp - kw) // sw + 1

    th = int(row_tile) if row_tile is not None else _pick_row_tile(out_h, out_w)
    if out_h % th != 0:
        raise ValueError(f"row_tile={th} must divide out_h={out_h}")
    n_tiles = out_h // th
    lanes = th * out_w
    kdim = kh * kw * cin

    # Merged-tap weight in bf16 (MXU-native); bias as (Cout, 1) f32 column so it
    # broadcasts along the lane (spatial) axis inside the kernel.
    w2 = jnp.transpose(weight, (0, 2, 3, 1)).reshape(cout, kdim).astype(jnp.bfloat16)
    b2 = bias.reshape(cout, 1).astype(jnp.float32)

    conv_kernel = functools.partial(_conv_stats_kernel, kh=kh, kw=kw, sh=sh, sw=sw,
                                    th=th, out_w=out_w)

    y_flat, stats = pl.pallas_call(
        conv_kernel,
        out_shape=(jax.ShapeDtypeStruct((n, cout, out_h * out_w), jnp.float32),
                   jax.ShapeDtypeStruct((n, 1, 2), jnp.float32)),
        grid_spec=pltpu.PrefetchScalarGridSpec(
            num_scalar_prefetch=0,
            grid=(n, n_tiles),
            in_specs=[
                # Padded sample; block index constant across the row axis -> fetched
                # once per sample and kept resident while its row tiles run.
                pl.BlockSpec((None, cin, hp, wp), lambda b, i: (b, 0, 0, 0)),
                pl.BlockSpec((cout, kdim), lambda b, i: (0, 0)),
                pl.BlockSpec((cout, 1), lambda b, i: (0, 0)),
            ],
            out_specs=[
                pl.BlockSpec((None, cout, lanes), lambda b, i: (b, 0, i)),
                # Stats block stays resident across the 'arbitrary' row axis (accumulator).
                pl.BlockSpec((None, 1, 2), lambda b, i: (b, 0, 0)),
            ],
        ),
        compiler_params=pltpu.CompilerParams(
            dimension_semantics=("parallel", "arbitrary"),
            vmem_limit_bytes=32 * 1024 * 1024),
    )(xp, w2, b2)

    if not apply_norm and not apply_activation:
        return y_flat.astype(x.dtype).reshape(n, cout, out_h, out_w)

    # Finalize GroupNorm(1 group) statistics (O(N) scalar work) and fold normalization +
    # per-channel affine into a single per-(sample, channel) scale / shift.
    if apply_norm:
        count = float(cout * out_h * out_w)
        ssum = stats[:, 0, 0]
        ssq = stats[:, 0, 1]
        mean = ssum / count
        var = jnp.maximum(ssq / count - mean * mean, 0.0)   # biased var, single pass
        rstd = lax.rsqrt(var + eps)
        a = gamma.astype(jnp.float32).reshape(1, cout) * rstd.reshape(n, 1)
        bsh = beta.astype(jnp.float32).reshape(1, cout) - mean.reshape(n, 1) * a
    else:
        a = jnp.ones((n, cout), jnp.float32)
        bsh = jnp.zeros((n, cout), jnp.float32)
    ab = jnp.stack([a, bsh], axis=1).reshape(n, 2, cout, 1)

    gn_kernel = functools.partial(_gn_act_kernel, apply_activation=apply_activation,
                                  negative_slope=negative_slope)

    out_flat = pl.pallas_call(
        gn_kernel,
        out_shape=jax.ShapeDtypeStruct((n, cout, out_h * out_w), x.dtype),
        grid_spec=pltpu.PrefetchScalarGridSpec(
            num_scalar_prefetch=0,
            grid=(n, n_tiles),
            in_specs=[
                pl.BlockSpec((None, cout, lanes), lambda b, i: (b, 0, i)),
                pl.BlockSpec((None, 2, cout, 1), lambda b, i: (b, 0, 0, 0)),
            ],
            out_specs=pl.BlockSpec((None, cout, lanes), lambda b, i: (b, 0, i)),
        ),
        compiler_params=pltpu.CompilerParams(
            dimension_semantics=("parallel", "parallel"),
            vmem_limit_bytes=32 * 1024 * 1024),
    )(y_flat, ab)

    return out_flat.reshape(n, cout, out_h, out_w)


def conv_layer_ref(x, weight, bias, gamma, beta, *, stride=1, apply_norm=True,
                   apply_activation=True, eps=1e-5, negative_slope=0.02):
    """Pure-JAX reference (same math as the PyTorch module, full f32)."""
    cout, _, kh, kw = weight.shape
    sh, sw = (stride, stride) if isinstance(stride, int) else tuple(stride)
    ph, pw = kh // 2, kw // 2
    xp = jnp.pad(x, ((0, 0), (0, 0), (ph, ph), (pw, pw)), mode="edge")
    y = lax.conv_general_dilated(xp, weight, (sh, sw), "VALID",
                                 dimension_numbers=("NCHW", "OIHW", "NCHW"))
    y = y + bias.reshape(1, cout, 1, 1)
    if apply_norm:
        mean = jnp.mean(y, axis=(1, 2, 3), keepdims=True)
        var = jnp.mean(jnp.square(y - mean), axis=(1, 2, 3), keepdims=True)
        y = (y - mean) / jnp.sqrt(var + eps)
        y = y * gamma.reshape(1, cout, 1, 1) + beta.reshape(1, cout, 1, 1)
    if apply_activation:
        y = jnp.where(y >= 0, y, negative_slope * y)
    return y


if __name__ == "__main__":
    # Small shapes: batch=2, in_channels=4, out_channels=8, H=W=16, kernel=3, stride=1.
    batch, cin, cout, hgt, wid, ksize, stride = 2, 4, 8, 16, 16, 3, 1

    key = jax.random.PRNGKey(0)
    kx, kw_, kb, kg, kbeta = jax.random.split(key, 5)

    x = jax.random.normal(kx, (batch, cin, hgt, wid), dtype=jnp.float32)

    # Deterministic parameter init (PyTorch Conv2d-style uniform bounds).
    fan_in = cin * ksize * ksize
    lim = 1.0 / (fan_in ** 0.5)
    conv_w = jax.random.uniform(kw_, (cout, cin, ksize, ksize), jnp.float32, -lim, lim)
    conv_b = jax.random.uniform(kb, (cout,), jnp.float32, -lim, lim)
    gamma = jnp.ones((cout,), jnp.float32) + 0.1 * jax.random.normal(kg, (cout,))
    beta = 0.1 * jax.random.normal(kbeta, (cout,), dtype=jnp.float32)

    ref = conv_layer_ref(x, conv_w, conv_b, gamma, beta, stride=stride)

    # Default row-tile choice (whole-sample tile at this size).
    out = conv_layer_pallas(x, conv_w, conv_b, gamma, beta, stride=stride)
    out = jax.block_until_ready(out)
    assert out.shape == ref.shape == (batch, cout, hgt, wid)
    # bf16 MXU operands vs full-f32 reference -> modest tolerance.
    assert jnp.allclose(out, ref, atol=3e-2, rtol=3e-2)

    # Multi-row-tile path: exercises the two-phase GroupNorm (stats accumulated across
    # the 'arbitrary' row-tile axis, finalized in the second pass).
    out2 = conv_layer_pallas(x, conv_w, conv_b, gamma, beta, stride=stride, row_tile=8)
    out2 = jax.block_until_ready(out2)
    assert jnp.allclose(out2, ref, atol=3e-2, rtol=3e-2)

    print("KERNEL_OK")
</pallas_src>

<mosaic_0001>
module attributes {stable_mosaic.version = 11 : i64} {
  func.func @_conv_stats_kernel(%arg0: i32, %arg1: i32, %arg2: memref<1x4x18x18xf32, #tpu.memory_space<vmem>>, %arg3: memref<8x36xbf16, #tpu.memory_space<vmem>>, %arg4: memref<8x1xf32, #tpu.memory_space<vmem>>, %arg5: memref<1x8x256xf32, #tpu.memory_space<vmem>>, %arg6: memref<1x1x2xf32, #tpu.memory_space<vmem>>) attributes {dimension_semantics = [#tpu.dimension_semantics<parallel>, #tpu.dimension_semantics<arbitrary>], iteration_bounds = array<i64: 2, 1>, scalar_prefetch = 0 : i64, scratch_operands = 0 : i64, tpu.core_type = #tpu.core_type<tc>, window_params = [{transform_indices = @transform_0, window_bounds = array<i64: 1, 4, 18, 18>}, {pipeline_mode = #tpu.pipeline_mode<synchronous>, transform_indices = @transform_1, window_bounds = array<i64: 8, 36>}, {pipeline_mode = #tpu.pipeline_mode<synchronous>, transform_indices = @transform_2, window_bounds = array<i64: 8, 1>}, {transform_indices = @transform_3, window_bounds = array<i64: 1, 8, 256>}, {transform_indices = @transform_4, window_bounds = array<i64: 1, 1, 2>}]} {
    %c16_i32 = arith.constant 16 : i32
    %0 = arith.muli %arg1, %c16_i32 : i32
    %1 = tpu.assume_multiple %0, 8 : i32
    %c0_i32 = arith.constant 0 : i32
    %2 = arith.addi %1, %c0_i32 : i32
    %c0 = arith.constant 0 : index
    %c0_0 = arith.constant 0 : index
    %3 = arith.index_cast %2 : i32 to index
    %c0_1 = arith.constant 0 : index
    %4 = vector.load %arg2[%c0, %c0_0, %3, %c0_1] : memref<1x4x18x18xf32, #tpu.memory_space<vmem>>, vector<1x4x16x16xf32>
    %5 = vector.shape_cast %4 : vector<1x4x16x16xf32> to vector<4x16x16xf32>
    %6 = arith.truncf %5 : vector<4x16x16xf32> to vector<4x16x16xbf16>
    %c0_2 = arith.constant 0 : index
    %c0_3 = arith.constant 0 : index
    %7 = arith.index_cast %2 : i32 to index
    %c1 = arith.constant 1 : index
    %8 = vector.load %arg2[%c0_2, %c0_3, %7, %c1] : memref<1x4x18x18xf32, #tpu.memory_space<vmem>>, vector<1x4x16x16xf32>
    %9 = vector.shape_cast %8 : vector<1x4x16x16xf32> to vector<4x16x16xf32>
    %10 = arith.truncf %9 : vector<4x16x16xf32> to vector<4x16x16xbf16>
    %c0_4 = arith.constant 0 : index
    %c0_5 = arith.constant 0 : index
    %11 = arith.index_cast %2 : i32 to index
    %c2 = arith.constant 2 : index
    %12 = vector.load %arg2[%c0_4, %c0_5, %11, %c2] : memref<1x4x18x18xf32, #tpu.memory_space<vmem>>, vector<1x4x16x16xf32>
    %13 = vector.shape_cast %12 : vector<1x4x16x16xf32> to vector<4x16x16xf32>
    %14 = arith.truncf %13 : vector<4x16x16xf32> to vector<4x16x16xbf16>
    %c1_i32 = arith.constant 1 : i32
    %15 = arith.addi %1, %c1_i32 : i32
    %c0_6 = arith.constant 0 : index
    %c0_7 = arith.constant 0 : index
    %16 = arith.index_cast %15 : i32 to index
    %c0_8 = arith.constant 0 : index
    %17 = vector.load %arg2[%c0_6, %c0_7, %16, %c0_8] : memref<1x4x18x18xf32, #tpu.memory_space<vmem>>, vector<1x4x16x16xf32>
    %18 = vector.shape_cast %17 : vector<1x4x16x16xf32> to vector<4x16x16xf32>
    %19 = arith.truncf %18 : vector<4x16x16xf32> to vector<4x16x16xbf16>
    %c0_9 = arith.constant 0 : index
    %c0_10 = arith.constant 0 : index
    %20 = arith.index_cast %15 : i32 to index
    %c1_11 = arith.constant 1 : index
    %21 = vector.load %arg2[%c0_9, %c0_10, %20, %c1_11] : memref<1x4x18x18xf32, #tpu.memory_space<vmem>>, vector<1x4x16x16xf32>
    %22 = vector.shape_cast %21 : vector<1x4x16x16xf32> to vector<4x16x16xf32>
    %23 = arith.truncf %22 : vector<4x16x16xf32> to vector<4x16x16xbf16>
    %c0_12 = arith.constant 0 : index
    %c0_13 = arith.constant 0 : index
    %24 = arith.index_cast %15 : i32 to index
    %c2_14 = arith.constant 2 : index
    %25 = vector.load %arg2[%c0_12, %c0_13, %24, %c2_14] : memref<1x4x18x18xf32, #tpu.memory_space<vmem>>, vector<1x4x16x16xf32>
    %26 = vector.shape_cast %25 : vector<1x4x16x16xf32> to vector<4x16x16xf32>
    %27 = arith.truncf %26 : vector<4x16x16xf32> to vector<4x16x16xbf16>
    %c2_i32 = arith.constant 2 : i32
    %28 = arith.addi %1, %c2_i32 : i32
    %c0_15 = arith.constant 0 : index
    %c0_16 = arith.constant 0 : index
    %29 = arith.index_cast %28 : i32 to index
    %c0_17 = arith.constant 0 : index
    %30 = vector.load %arg2[%c0_15, %c0_16, %29, %c0_17] : memref<1x4x18x18xf32, #tpu.memory_space<vmem>>, vector<1x4x16x16xf32>
    %31 = vector.shape_cast %30 : vector<1x4x16x16xf32> to vector<4x16x16xf32>
    %32 = arith.truncf %31 : vector<4x16x16xf32> to vector<4x16x16xbf16>
    %c0_18 = arith.constant 0 : index
    %c0_19 = arith.constant 0 : index
    %33 = arith.index_cast %28 : i32 to index
    %c1_20 = arith.constant 1 : index
    %34 = vector.load %arg2[%c0_18, %c0_19, %33, %c1_20] : memref<1x4x18x18xf32, #tpu.memory_space<vmem>>, vector<1x4x16x16xf32>
    %35 = vector.shape_cast %34 : vector<1x4x16x16xf32> to vector<4x16x16xf32>
    %36 = arith.truncf %35 : vector<4x16x16xf32> to vector<4x16x16xbf16>
    %c0_21 = arith.constant 0 : index
    %c0_22 = arith.constant 0 : index
    %37 = arith.index_cast %28 : i32 to index
    %c2_23 = arith.constant 2 : index
    %38 = vector.load %arg2[%c0_21, %c0_22, %37, %c2_23] : memref<1x4x18x18xf32, #tpu.memory_space<vmem>>, vector<1x4x16x16xf32>
    %39 = vector.shape_cast %38 : vector<1x4x16x16xf32> to vector<4x16x16xf32>
    %40 = arith.truncf %39 : vector<4x16x16xf32> to vector<4x16x16xbf16>
    %41 = tpu.concatenate %6, %10, %14, %19, %23, %27, %32, %36, %40 in 0 : vector<4x16x16xbf16>, vector<4x16x16xbf16>, vector<4x16x16xbf16>, vector<4x16x16xbf16>, vector<4x16x16xbf16>, vector<4x16x16xbf16>, vector<4x16x16xbf16>, vector<4x16x16xbf16>, vector<4x16x16xbf16> -> vector<36x16x16xbf16>
    %42 = vector.shape_cast %41 : vector<36x16x16xbf16> to vector<36x256xbf16>
    %c0_24 = arith.constant 0 : index
    %c0_25 = arith.constant 0 : index
    %43 = vector.load %arg3[%c0_24, %c0_25] : memref<8x36xbf16, #tpu.memory_space<vmem>>, vector<8x36xbf16>
    %cst = arith.constant dense<0.000000e+00> : vector<8x256xf32>
    %44 = tpu.matmul %43, %42, %cst {dimension_numbers = #tpu.dot_dimension_numbers<[1], [0], [0], [1], [0, 0, 1, 1], [], []>} : vector<8x36xbf16>, vector<36x256xbf16>, vector<8x256xf32> -> vector<8x256xf32>
    %c0_26 = arith.constant 0 : index
    %c0_27 = arith.constant 0 : index
    %45 = vector.load %arg4[%c0_26, %c0_27] : memref<8x1xf32, #tpu.memory_space<vmem>>, vector<8x1xf32>
    %46 = vector.broadcast %45 : vector<8x1xf32> to vector<8x256xf32>
    %47 = arith.addf %44, %46 : vector<8x256xf32>
    %c0_28 = arith.constant 0 : index
    %c0_29 = arith.constant 0 : index
    %c0_30 = arith.constant 0 : index
    %48 = vector.load %arg5[%c0_28, %c0_29, %c0_30] : memref<1x8x256xf32, #tpu.memory_space<vmem>>, vector<1x8x256xf32>
    %49 = vector.shape_cast %48 : vector<1x8x256xf32> to vector<8x256xf32>
    %50 = vector.shape_cast %47 : vector<8x256xf32> to vector<1x8x256xf32>
    tpu.vector_store %arg5[%c0_28, %c0_29, %c0_30], %50 {strides = array<i32>} : memref<1x8x256xf32, #tpu.memory_space<vmem>>, vector<1x8x256xf32>,
    %51 = vector.shape_cast %47 : vector<8x256xf32> to vector<1x8x256xf32>
    %cst_31 = arith.constant dense<0.000000e+00> : vector<1xf32>
    %52 = vector.multi_reduction <add>, %51, %cst_31 [1, 2] : vector<1x8x256xf32> to vector<1xf32>
    %53 = vector.shape_cast %52 : vector<1xf32> to vector<1x1x1xf32>
    %54 = vector.extract %53[0, 0, 0] : f32 from vector<1x1x1xf32>
    %55 = vector.broadcast %54 : f32 to vector<1x1xf32>
    %56 = arith.mulf %47, %47 : vector<8x256xf32>
    %57 = vector.shape_cast %56 : vector<8x256xf32> to vector<1x8x256xf32>
    %cst_32 = arith.constant dense<0.000000e+00> : vector<1xf32>
    %58 = vector.multi_reduction <add>, %57, %cst_32 [1, 2] : vector<1x8x256xf32> to vector<1xf32>
    %59 = vector.shape_cast %58 : vector<1xf32> to vector<1x1x1xf32>
    %60 = vector.extract %59[0, 0, 0] : f32 from vector<1x1x1xf32>
    %61 = vector.broadcast %60 : f32 to vector<1x1xf32>
    %62 = tpu.concatenate %55, %61 in 1 : vector<1x1xf32>, vector<1x1xf32> -> vector<1x2xf32>
    %c0_i32_33 = arith.constant 0 : i32
    %63 = arith.cmpi eq, %arg1, %c0_i32_33 : i32
    %64 = arith.extui %63 : i1 to i32
    %c0_i32_34 = arith.constant 0 : i32
    %65 = arith.cmpi ne, %64, %c0_i32_34 : i32
    scf.if %65 {
      %cst_41 = arith.constant 0.000000e+00 : f32
      %72 = vector.broadcast %cst_41 : f32 to vector<1x2xf32>
      %c0_42 = arith.constant 0 : index
      %c0_43 = arith.constant 0 : index
      %c0_44 = arith.constant 0 : index
      %73 = vector.load %arg6[%c0_42, %c0_43, %c0_44] : memref<1x1x2xf32, #tpu.memory_space<vmem>>, vector<1x1x2xf32>
      %74 = vector.shape_cast %73 : vector<1x1x2xf32> to vector<1x2xf32>
      %75 = vector.shape_cast %72 : vector<1x2xf32> to vector<1x1x2xf32>
      tpu.vector_store %arg6[%c0_42, %c0_43, %c0_44], %75 {strides = array<i32>} : memref<1x1x2xf32, #tpu.memory_space<vmem>>, vector<1x1x2xf32>,
    } else {
    }
    %c0_35 = arith.constant 0 : index
    %c0_36 = arith.constant 0 : index
    %c0_37 = arith.constant 0 : index
    %66 = vector.load %arg6[%c0_35, %c0_36, %c0_37] : memref<1x1x2xf32, #tpu.memory_space<vmem>>, vector<1x1x2xf32>
    %67 = vector.shape_cast %66 : vector<1x1x2xf32> to vector<1x2xf32>
    %68 = arith.addf %67, %62 : vector<1x2xf32>
    %c0_38 = arith.constant 0 : index
    %c0_39 = arith.constant 0 : index
    %c0_40 = arith.constant 0 : index
    %69 = vector.load %arg6[%c0_38, %c0_39, %c0_40] : memref<1x1x2xf32, #tpu.memory_space<vmem>>, vector<1x1x2xf32>
    %70 = vector.shape_cast %69 : vector<1x1x2xf32> to vector<1x2xf32>
    %71 = vector.shape_cast %68 : vector<1x2xf32> to vector<1x1x2xf32>
    tpu.vector_store %arg6[%c0_38, %c0_39, %c0_40], %71 {strides = array<i32>} : memref<1x1x2xf32, #tpu.memory_space<vmem>>, vector<1x1x2xf32>,
    return
  }
  func.func @transform_0(%arg0: i32, %arg1: i32) -> (i32, i32, i32, i32) {
    %c0_i32 = arith.constant 0 : i32
    %c0_i32_0 = arith.constant 0 : i32
    %c0_i32_1 = arith.constant 0 : i32
    %c0_i32_2 = arith.constant 0 : i32
    return %arg0, %c0_i32, %c0_i32_0, %c0_i32_1 : i32, i32, i32, i32
  }
  func.func @transform_1(%arg0: i32, %arg1: i32) -> (i32, i32) {
    %c0_i32 = arith.constant 0 : i32
    %c0_i32_0 = arith.constant 0 : i32
    %c0_i32_1 = arith.constant 0 : i32
    return %c0_i32, %c0_i32_0 : i32, i32
  }
  func.func @transform_2(%arg0: i32, %arg1: i32) -> (i32, i32) {
    %c0_i32 = arith.constant 0 : i32
    %c0_i32_0 = arith.constant 0 : i32
    %c0_i32_1 = arith.constant 0 : i32
    return %c0_i32, %c0_i32_0 : i32, i32
  }
  func.func @transform_3(%arg0: i32, %arg1: i32) -> (i32, i32, i32) {
    %c0_i32 = arith.constant 0 : i32
    %c0_i32_0 = arith.constant 0 : i32
    return %arg0, %c0_i32, %arg1 : i32, i32, i32
  }
  func.func @transform_4(%arg0: i32, %arg1: i32) -> (i32, i32, i32) {
    %c0_i32 = arith.constant 0 : i32
    %c0_i32_0 = arith.constant 0 : i32
    %c0_i32_1 = arith.constant 0 : i32
    return %arg0, %c0_i32, %c0_i32_0 : i32, i32, i32
  }
}

</mosaic_0001>

<llo_original>
// kernel: tpu_custom_call.1
$region0: #{tpu_custom_call.1}
  #allocation0 [shape = 'u32[]', space=smem, size = 0x4, offset = 0x4, fixed_abs, tag = 'smem constant byte address 0x4 - core index']
  #allocation1 [shape = 'u32[144,128]{1,0:T(1,128)}', space=vmem, size = 0x12000, scoped, tag = 'internal scratch']
  %s0 = inlined_call_operand.vmem [shape: f32[2,4,18,18], index: 0, kind: input, shape index: {}]
  %s1 = inlined_call_operand.vmem [shape: bf16[8,36], index: 1, kind: input, shape index: {}]
  %s2 = inlined_call_operand.vmem [shape: f32[8,1], index: 2, kind: input, shape index: {}]
  %s3 = inlined_call_operand.hbm [shape: f32[2,8,256], index: 3, kind: output, shape index: {0}]
  %s4 = inlined_call_operand.hbm [shape: f32[2,1,2], index: 4, kind: output, shape index: {1}]
  %5 = xla_tuple %s3, %s4
  %s6 = sld [smem:[#allocation0]]
  $region57: #{tpu_custom_call.1} parent=0
    _
  %s8 = ssub.s32 1, %s6
  %s9 = scalar_select 0, %s8, %s6
  $region1: #{tpu_custom_call.1} parent=0
    #allocation2 [shape = 'u8[16384]{0}', space=vmem, size = 0x4000, scoped, tag = 'output window, operand 0']
    #allocation3 [shape = 's32[2]{0}', space=sflag, size = 0x8, scoped, tag = 'scoped memory for tpu_custom_call.1']
    #allocation4 [shape = 'u8[1024]{0}', space=vmem, size = 0x400, scoped, tag = 'output window, operand 1']
    #allocation5 [shape = 's32[2]{0}', space=sflag, size = 0x8, scoped, tag = 'scoped memory for tpu_custom_call.1']
    %10 = vsyncpa [#allocation3], 0
    %s11 = scalar_lea.sflag [#allocation3], 1
    %12 = vsyncpa %s11, 0
    %13 = vsyncpa [#allocation5], 0
    %s14 = scalar_lea.sflag [#allocation5], 1
    %15 = vsyncpa %s14, 0
    loop: start=0, step=1, limit=4
    $region2: #{tpu_custom_call.1} parent=1 // loop_pre_header
      _
    $region3: #{tpu_custom_call.1} parent=1 // loop_header
      %s17 = sphi 0, %s21
      %p18 = scmp.ge.s32.totalorder %s17, 4
      %s24 = sphi 0, %s36
      %s25 = sphi 0, %s32
      %s26 = sphi 0, %s24
      %s27 = sphi 0, %s25
      %s28 = sphi 0, %s26
      %s29 = sphi 0, %s27
      %s39 = sphi 0, %s41
      %s42 = sphi 0, %s39
      %s43 = sphi 0, %s42
      %s59 = sphi 0, %s43
      %s63 = sphi 0, %s63
      %s65 = sphi 0, %s63
      %s66 = sphi 0, %s65
      %s80 = sphi 0, %s66
      %s84 = sphi 0, %s84
      %s86 = sphi 0, %s84
      %s87 = sphi 0, %s86
      %s101 = sphi 0, %s87
      %s109 = sphi 0, %s111
      %s112 = sphi 0, %s109
      %s113 = sphi 0, %s112
      %s129 = sphi 0, %s113
      %s135 = sphi 0, %s137
      %s138 = sphi 0, %s135
      %s139 = sphi 0, %s138
      %s155 = sphi 0, %s139
    $region4: #{tpu_custom_call.1} parent=1 // loop_header_branch
      %20 = sbr.rel (%p18) target = $region8
    $region5: #{tpu_custom_call.1} parent=1 // loop_body
      %s22 = ssub.s32 %s17, 1
      %s23 = ssub.s32 %s17, 2
      %s30 = sadd.s32 1, %s25
      %p31 = scmp.ge.s32.totalorder %s30, 1
      %s32 = scalar_select %p31, 0, %s30
      %s33 = sadd.s32 1, %s24
      %s34 = scalar_select %p31, %s33, %s24
      %p35 = scmp.ge.s32.totalorder %s34, 2
      %s36 = scalar_select %p35, 0, %s34
      %s37 = ssub.s32 %s24, %s36
      %p38 = scmp.eq.s32.totalorder %s37, 0
      %s40 = sadd.s32 %s39, 1
      %s41 = scalar_select %p38, %s39, %s40
      %p44 = pneg %p38
      %p45 = scmp.eq.s32.totalorder %s17, 1
      %p46 = por %p44, %p45
      %p47 = scmp.ne.s32.totalorder %s39, %s42
      %p48 = scmp.eq.s32.totalorder %s17, 0
      %p49 = por %p47, %p48
      %p50 = scmp.ne.s32.totalorder %s39, %s42
      %p51 = scmp.eq.s32.totalorder %s22, 1
      %p52 = por %p50, %p51
      %p53 = scmp.ne.s32.totalorder %s42, %s43
      %p54 = scmp.eq.s32.totalorder %s22, 0
      %p55 = por %p53, %p54
      %p56 = scmp.ne.s32.totalorder %s42, %s43
      %p57 = scmp.eq.s32.totalorder %s23, 1
      %p58 = por %p56, %p57
      %p60 = scmp.ne.s32.totalorder %s43, %s59
      %p61 = scmp.eq.s32.totalorder %s23, 0
      %p62 = por %p60, %p61
      %s64 = sadd.s32 %s63, 1
      %p67 = scmp.eq.s32.totalorder %s17, 1
      %p68 = scmp.ne.s32.totalorder %s63, %s65
      %p69 = scmp.eq.s32.totalorder %s17, 0
      %p70 = por %p68, %p69
      %p71 = scmp.ne.s32.totalorder %s63, %s65
      %p72 = scmp.eq.s32.totalorder %s22, 1
      %p73 = por %p71, %p72
      %p74 = scmp.ne.s32.totalorder %s65, %s66
      %p75 = scmp.eq.s32.totalorder %s22, 0
      %p76 = por %p74, %p75
      %p77 = scmp.ne.s32.totalorder %s65, %s66
      %p78 = scmp.eq.s32.totalorder %s23, 1
      %p79 = por %p77, %p78
      %p81 = scmp.ne.s32.totalorder %s66, %s80
      %p82 = scmp.eq.s32.totalorder %s23, 0
      %p83 = por %p81, %p82
      %s85 = sadd.s32 %s84, 1
      %p88 = scmp.eq.s32.totalorder %s17, 1
      %p89 = scmp.ne.s32.totalorder %s84, %s86
      %p90 = scmp.eq.s32.totalorder %s17, 0
      %p91 = por %p89, %p90
      %p92 = scmp.ne.s32.totalorder %s84, %s86
      %p93 = scmp.eq.s32.totalorder %s22, 1
      %p94 = por %p92, %p93
      %p95 = scmp.ne.s32.totalorder %s86, %s87
      %p96 = scmp.eq.s32.totalorder %s22, 0
      %p97 = por %p95, %p96
      %p98 = scmp.ne.s32.totalorder %s86, %s87
      %p99 = scmp.eq.s32.totalorder %s23, 1
      %p100 = por %p98, %p99
      %p102 = scmp.ne.s32.totalorder %s87, %s101
      %p103 = scmp.eq.s32.totalorder %s23, 0
      %p104 = por %p102, %p103
      %s105 = ssub.s32 %s24, %s36
      %s106 = ssub.s32 %s25, %s32
      %s107 = sor.u32 %s105, %s106
      %p108 = scmp.eq.s32.totalorder %s107, 0
      %s110 = sadd.s32 %s109, 1
      %s111 = scalar_select %p108, %s109, %s110
      %p114 = pneg %p108
      %p115 = scmp.eq.s32.totalorder %s17, 1
      %p116 = por %p114, %p115
      %p117 = scmp.ne.s32.totalorder %s109, %s112
      %p118 = scmp.eq.s32.totalorder %s17, 0
      %p119 = por %p117, %p118
      %p120 = scmp.ne.s32.totalorder %s109, %s112
      %p121 = scmp.eq.s32.totalorder %s22, 1
      %p122 = por %p120, %p121
      %p123 = scmp.ne.s32.totalorder %s112, %s113
      %p124 = scmp.eq.s32.totalorder %s22, 0
      %p125 = por %p123, %p124
      %p126 = scmp.ne.s32.totalorder %s112, %s113
      %p127 = scmp.eq.s32.totalorder %s23, 1
      %p128 = por %p126, %p127
      %p130 = scmp.ne.s32.totalorder %s113, %s129
      %p131 = scmp.eq.s32.totalorder %s23, 0
      %p132 = por %p130, %p131
      %s133 = ssub.s32 %s24, %s36
      %p134 = scmp.eq.s32.totalorder %s133, 0
      %s136 = sadd.s32 %s135, 1
      %s137 = scalar_select %p134, %s135, %s136
      %p140 = pneg %p134
      %p141 = scmp.eq.s32.totalorder %s17, 1
      %p142 = por %p140, %p141
      %p143 = scmp.ne.s32.totalorder %s135, %s138
      %p144 = scmp.eq.s32.totalorder %s17, 0
      %p145 = por %p143, %p144
      %p146 = scmp.ne.s32.totalorder %s135, %s138
      %p147 = scmp.eq.s32.totalorder %s22, 1
      %p148 = por %p146, %p147
      %p149 = scmp.ne.s32.totalorder %s138, %s139
      %p150 = scmp.eq.s32.totalorder %s22, 0
      %p151 = por %p149, %p150
      %p152 = scmp.ne.s32.totalorder %s138, %s139
      %p153 = scmp.eq.s32.totalorder %s23, 1
      %p154 = por %p152, %p153
      %p156 = scmp.ne.s32.totalorder %s139, %s155
      %p157 = scmp.eq.s32.totalorder %s23, 0
      %p158 = por %p156, %p157
      %p159 = scmp.le.s32.totalorder 1, %s17
      %p160 = scmp.lt.s32.totalorder %s17, 3
      %p161 = pnand %p159, %p160
      %p162 = pneg %p161
      // Predicated region
      $region9: #{tpu_custom_call.1} parent=5 // pred_check
        _
      $region10: #{tpu_custom_call.1} parent=5 // pred_check_branch
        %164 = sbr.rel (%p161) target = $region12
      $region11: #{tpu_custom_call.1} parent=5 // pred_region
        %s165 = ssub.s32 %s17, 1
        // Predicated region
        $region13: #{tpu_custom_call.1} parent=11 // pred_check
          %p166 = pneg %p76
        $region14: #{tpu_custom_call.1} parent=11 // pred_check_branch
          %168 = sbr.rel (%p166) target = $region16
        $region15: #{tpu_custom_call.1} parent=11 // pred_region
          _
        $region16: #{tpu_custom_call.1} parent=11 // pred_fallthru
          _
        // Predicated region
        $region17: #{tpu_custom_call.1} parent=11 // pred_check
          %p169 = pneg %p97
        $region18: #{tpu_custom_call.1} parent=11 // pred_check_branch
          %171 = sbr.rel (%p169) target = $region20
        $region19: #{tpu_custom_call.1} parent=11 // pred_region
          _
        $region20: #{tpu_custom_call.1} parent=11 // pred_fallthru
          _
      $region12: #{tpu_custom_call.1} parent=5 // pred_fallthru
        _
      %p172 = scmp.lt.s32.totalorder %s17, 2
      // Predicated region
      $region21: #{tpu_custom_call.1} parent=5 // pred_check
        %p173 = pneg %p172
      $region22: #{tpu_custom_call.1} parent=5 // pred_check_branch
        %175 = sbr.rel (%p173) target = $region24
      $region23: #{tpu_custom_call.1} parent=5 // pred_region
        // Predicated region
        $region25: #{tpu_custom_call.1} parent=23 // pred_check
          %p176 = pneg %p49
        $region26: #{tpu_custom_call.1} parent=23 // pred_check_branch
          %178 = sbr.rel (%p176) target = $region28
        $region27: #{tpu_custom_call.1} parent=23 // pred_region
          %p179 = scmp.lt.s32.totalorder %s24, 1
          %s180 = scalar_select %p179, %s24, 1
          %s181 = smul.addr %s180, 12
          %s182 = smul.addr %s181, 8
          %s183 = scalar_lea.vmem %s0, %s182
        $region28: #{tpu_custom_call.1} parent=23 // pred_fallthru
          _
      $region24: #{tpu_custom_call.1} parent=5 // pred_fallthru
        _
      %p184 = scmp.le.s32.totalorder 1, %s17
      %p185 = scmp.lt.s32.totalorder %s17, 3
      %p186 = pnand %p184, %p185
      %p187 = pneg %p186
      // Predicated region
      $region29: #{tpu_custom_call.1} parent=5 // pred_check
        _
      $region30: #{tpu_custom_call.1} parent=5 // pred_check_branch
        %189 = sbr.rel (%p186) target = $region32
      $region31: #{tpu_custom_call.1} parent=5 // pred_region
        %s190 = ssub.s32 %s17, 1
        %p191 = scmp.lt.s32.totalorder %s26, 1
        %s192 = scalar_select %p191, %s26, 1
        %s193 = smul.addr %s192, 12
        %s194 = smul.addr %s193, 8
        %s195 = scalar_lea.vmem %s0, %s194
        %p196 = pneg %p55
        %p197 = pneg %p52
        %p198 = pneg %p76
        %p199 = pneg %p73
        %p200 = pneg %p97
        %p201 = pneg %p94
        %p202 = pneg %p125
        %p203 = pneg %p122
        %s204 = sand.u32 %s112, 1
        %s205 = scalar_lea.sflag [#allocation3], %s204
        %s206 = sand.u32 %s112, 1
        %s207 = smul.addr %s206, 16
        %s208 = scalar_lea.vmem [#allocation2], %s207
        %p209 = pneg %p151
        %p210 = pneg %p148
        %s211 = sand.u32 %s138, 1
        %s212 = scalar_lea.sflag [#allocation5], %s211
        %s213 = sand.u32 %s138, 1
        %s214 = scalar_lea.vmem [#allocation4], %s213
        %p215 = scmp.lt.s32.totalorder %s26, 1
        %s216 = scalar_select %p215, %s26, 1
        %s217 = smul.addr %s216, 12
        %s218 = smul.addr %s217, 8
        %s219 = scalar_lea.vmem %s0, %s218
        %s220 = smul.u32 2, %s27
        %s222 = smul.u32 %s27, 16
        %s223 = scalar_lea.vmem %s219, %s222
        %v224 = vld [vmem:[%s223] sm:$0xff]
        %v225 = vld [vmem:[%s223 + $0x8] sm:$0xff]
        %v226 = vld [vmem:[%s223 + $0x18] sm:$0xff]
        %v227 = vld [vmem:[%s223 + $0x20] sm:$0xff]
        %v228 = vld [vmem:[%s223 + $0x30] sm:$0xff]
        %v229 = vld [vmem:[%s223 + $0x38] sm:$0xff]
        %v230 = vld [vmem:[%s223 + $0x48] sm:$0xff]
        %v231 = vld [vmem:[%s223 + $0x50] sm:$0xff]
        %v232 = vpack.c.bf16 %v225, %v224
        %v233 = vpack.c.bf16 %v227, %v226
        %v234 = vpack.c.bf16 %v229, %v228
        %v235 = vpack.c.bf16 %v231, %v230
        %s236 = sadd.s32 %s222, 1
        %s237 = scalar_lea.vmem %s219, %s236
        %v238 = vld [vmem:[%s237] sm:$0xff]
        %v239 = vld [vmem:[%s237 + $0x8] sm:$0xff]
        %v240 = vld [vmem:[%s237 + $0x18] sm:$0xff]
        %v241 = vld [vmem:[%s237 + $0x20] sm:$0xff]
        %v242 = vld [vmem:[%s237 + $0x30] sm:$0xff]
        %v243 = vld [vmem:[%s237 + $0x38] sm:$0xff]
        %v244 = vld [vmem:[%s237 + $0x48] sm:$0xff]
        %v245 = vld [vmem:[%s237 + $0x50] sm:$0xff]
        %v246 = vpack.c.bf16 %v239, %v238
        %v247 = vpack.c.bf16 %v241, %v240
        %v248 = vpack.c.bf16 %v243, %v242
        %v249 = vpack.c.bf16 %v245, %v244
        %s250 = sadd.s32 %s222, 2
        %s251 = scalar_lea.vmem %s219, %s250
        %v252 = vld [vmem:[%s251] sm:$0xff]
        %v253 = vld [vmem:[%s251 + $0x8] sm:$0xff]
        %v254 = vld [vmem:[%s251 + $0x18] sm:$0xff]
        %v255 = vld [vmem:[%s251 + $0x20] sm:$0xff]
        %v256 = vld [vmem:[%s251 + $0x30] sm:$0xff]
        %v257 = vld [vmem:[%s251 + $0x38] sm:$0xff]
        %v258 = vld [vmem:[%s251 + $0x48] sm:$0xff]
        %v259 = vld [vmem:[%s251 + $0x50] sm:$0xff]
        %v260 = vpack.c.bf16 %v253, %v252
        %v261 = vpack.c.bf16 %v255, %v254
        %v262 = vpack.c.bf16 %v257, %v256
        %v263 = vpack.c.bf16 %v259, %v258
        %268 = vrot.lane.b32.xlu0 %v232, 127
        %v269 = vpop.permute.xlu0 %268
        %270 = vrot.lane.b32.xlu0 %v233, 127
        %v271 = vpop.permute.xlu0 %270
        %272 = vrot.lane.b32.xlu0 %v234, 127
        %v273 = vpop.permute.xlu0 %272
        %274 = vrot.lane.b32.xlu0 %v235, 127
        %v275 = vpop.permute.xlu0 %274
        %276 = vrot.lane.b32.xlu0 %v232, 126
        %v277 = vpop.permute.xlu0 %276
        %278 = vrot.lane.b32.xlu0 %v233, 126
        %v279 = vpop.permute.xlu0 %278
        %280 = vrot.lane.b32.xlu0 %v234, 126
        %v281 = vpop.permute.xlu0 %280
        %282 = vrot.lane.b32.xlu0 %v235, 126
        %v283 = vpop.permute.xlu0 %282
        %288 = vrot.lane.b32.xlu0 %v246, 127
        %v289 = vpop.permute.xlu0 %288
        %290 = vrot.lane.b32.xlu0 %v247, 127
        %v291 = vpop.permute.xlu0 %290
        %292 = vrot.lane.b32.xlu0 %v248, 127
        %v293 = vpop.permute.xlu0 %292
        %294 = vrot.lane.b32.xlu0 %v249, 127
        %v295 = vpop.permute.xlu0 %294
        %296 = vrot.lane.b32.xlu0 %v246, 126
        %v297 = vpop.permute.xlu0 %296
        %298 = vrot.lane.b32.xlu0 %v247, 126
        %v299 = vpop.permute.xlu0 %298
        %300 = vrot.lane.b32.xlu0 %v248, 126
        %v301 = vpop.permute.xlu0 %300
        %302 = vrot.lane.b32.xlu0 %v249, 126
        %v303 = vpop.permute.xlu0 %302
        %308 = vrot.lane.b32.xlu0 %v260, 127
        %v309 = vpop.permute.xlu0 %308
        %310 = vrot.lane.b32.xlu0 %v261, 127
        %v311 = vpop.permute.xlu0 %310
        %312 = vrot.lane.b32.xlu0 %v262, 127
        %v313 = vpop.permute.xlu0 %312
        %314 = vrot.lane.b32.xlu0 %v263, 127
        %v315 = vpop.permute.xlu0 %314
        %316 = vrot.lane.b32.xlu0 %v260, 126
        %v317 = vpop.permute.xlu0 %316
        %318 = vrot.lane.b32.xlu0 %v261, 126
        %v319 = vpop.permute.xlu0 %318
        %320 = vrot.lane.b32.xlu0 %v262, 126
        %v321 = vpop.permute.xlu0 %320
        %322 = vrot.lane.b32.xlu0 %v263, 126
        %v323 = vpop.permute.xlu0 %322
        %v326 = vpack.i.b16 %v233, %v232
        %v328 = vshrl.u32 %v232, 16
        %v329 = vshrl.u32 %v233, 16
        %v330 = vpack.i.b16 %v329, %v328
        %v334 = vpack.i.b16 %v235, %v234
        %v336 = vshrl.u32 %v234, 16
        %v337 = vshrl.u32 %v235, 16
        %v338 = vpack.i.b16 %v337, %v336
        %v342 = vpack.i.b16 %v271, %v269
        %v344 = vshrl.u32 %v269, 16
        %v345 = vshrl.u32 %v271, 16
        %v346 = vpack.i.b16 %v345, %v344
        %v350 = vpack.i.b16 %v275, %v273
        %v352 = vshrl.u32 %v273, 16
        %v353 = vshrl.u32 %v275, 16
        %v354 = vpack.i.b16 %v353, %v352
        %v358 = vpack.i.b16 %v279, %v277
        %v360 = vshrl.u32 %v277, 16
        %v361 = vshrl.u32 %v279, 16
        %v362 = vpack.i.b16 %v361, %v360
        %v366 = vpack.i.b16 %v283, %v281
        %v368 = vshrl.u32 %v281, 16
        %v369 = vshrl.u32 %v283, 16
        %v370 = vpack.i.b16 %v369, %v368
        %v374 = vpack.i.b16 %v247, %v246
        %v376 = vshrl.u32 %v246, 16
        %v377 = vshrl.u32 %v247, 16
        %v378 = vpack.i.b16 %v377, %v376
        %v382 = vpack.i.b16 %v249, %v248
        %v384 = vshrl.u32 %v248, 16
        %v385 = vshrl.u32 %v249, 16
        %v386 = vpack.i.b16 %v385, %v384
        %v390 = vpack.i.b16 %v291, %v289
        %v392 = vshrl.u32 %v289, 16
        %v393 = vshrl.u32 %v291, 16
        %v394 = vpack.i.b16 %v393, %v392
        %v398 = vpack.i.b16 %v295, %v293
        %v400 = vshrl.u32 %v293, 16
        %v401 = vshrl.u32 %v295, 16
        %v402 = vpack.i.b16 %v401, %v400
        %v406 = vpack.i.b16 %v299, %v297
        %v408 = vshrl.u32 %v297, 16
        %v409 = vshrl.u32 %v299, 16
        %v410 = vpack.i.b16 %v409, %v408
        %v414 = vpack.i.b16 %v303, %v301
        %v416 = vshrl.u32 %v301, 16
        %v417 = vshrl.u32 %v303, 16
        %v418 = vpack.i.b16 %v417, %v416
        %v422 = vpack.i.b16 %v261, %v260
        %v424 = vshrl.u32 %v260, 16
        %v425 = vshrl.u32 %v261, 16
        %v426 = vpack.i.b16 %v425, %v424
        %v430 = vpack.i.b16 %v263, %v262
        %v432 = vshrl.u32 %v262, 16
        %v433 = vshrl.u32 %v263, 16
        %v434 = vpack.i.b16 %v433, %v432
        %v438 = vpack.i.b16 %v311, %v309
        %v440 = vshrl.u32 %v309, 16
        %v441 = vshrl.u32 %v311, 16
        %v442 = vpack.i.b16 %v441, %v440
        %v446 = vpack.i.b16 %v315, %v313
        %v448 = vshrl.u32 %v313, 16
        %v449 = vshrl.u32 %v315, 16
        %v450 = vpack.i.b16 %v449, %v448
        %v454 = vpack.i.b16 %v319, %v317
        %v456 = vshrl.u32 %v317, 16
        %v457 = vshrl.u32 %v319, 16
        %v458 = vpack.i.b16 %v457, %v456
        %v462 = vpack.i.b16 %v323, %v321
        %v464 = vshrl.u32 %v321, 16
        %v465 = vshrl.u32 %v323, 16
        %v466 = vpack.i.b16 %v465, %v464
        %v469 = vpack.i.b16 0, 0
        %v471 = vshrl.u32 0, 16
        %v472 = vpack.i.b16 %v471, %v471
        %v474 = vcombine.low %v326, %v342
        %v475 = vcombine.high %v326, %v342
        %v477 = vunpack.c.l.s4 1983009808
        %v478 = vunpack.c.0.s8 %v477
        %v479 = vlaneseq
        %v480 = vshrl.u32 %v479, 7
        %v481 = vsub.s32 %v478, %v480
        %v482 = vrot.slane %v474, %v481
        %v484 = vunpack.c.l.s4 1983009808
        %v485 = vunpack.c.0.s8 %v484
        %v486 = vlaneseq
        %v487 = vshrl.u32 %v486, 7
        %v488 = vsub.s32 %v485, %v487
        %v489 = vrot.slane %v475, %v488
        %v490 = vcombine.low %v334, %v350
        %v491 = vcombine.high %v334, %v350
        %v493 = vunpack.c.l.s4 1983009808
        %v494 = vunpack.c.0.s8 %v493
        %v495 = vlaneseq
        %v496 = vshrl.u32 %v495, 7
        %v497 = vsub.s32 %v494, %v496
        %v498 = vrot.slane %v490, %v497
        %v500 = vunpack.c.l.s4 1983009808
        %v501 = vunpack.c.0.s8 %v500
        %v502 = vlaneseq
        %v503 = vshrl.u32 %v502, 7
        %v504 = vsub.s32 %v501, %v503
        %v505 = vrot.slane %v491, %v504
        %v506 = vcombine.low %v358, %v374
        %v507 = vcombine.high %v358, %v374
        %v509 = vunpack.c.l.s4 1983009808
        %v510 = vunpack.c.0.s8 %v509
        %v511 = vlaneseq
        %v512 = vshrl.u32 %v511, 7
        %v513 = vsub.s32 %v510, %v512
        %v514 = vrot.slane %v506, %v513
        %v516 = vunpack.c.l.s4 1983009808
        %v517 = vunpack.c.0.s8 %v516
        %v518 = vlaneseq
        %v519 = vshrl.u32 %v518, 7
        %v520 = vsub.s32 %v517, %v519
        %v521 = vrot.slane %v507, %v520
        %v522 = vcombine.low %v366, %v382
        %v523 = vcombine.high %v366, %v382
        %v525 = vunpack.c.l.s4 1983009808
        %v526 = vunpack.c.0.s8 %v525
        %v527 = vlaneseq
        %v528 = vshrl.u32 %v527, 7
        %v529 = vsub.s32 %v526, %v528
        %v530 = vrot.slane %v522, %v529
        %v532 = vunpack.c.l.s4 1983009808
        %v533 = vunpack.c.0.s8 %v532
        %v534 = vlaneseq
        %v535 = vshrl.u32 %v534, 7
        %v536 = vsub.s32 %v533, %v535
        %v537 = vrot.slane %v523, %v536
        %v538 = vcombine.low %v482, %v498
        %v539 = vcombine.high %v482, %v498
        %v541 = vunpack.c.l.s4 1934713408
        %v542 = vunpack.c.0.s8 %v541
        %v543 = vlaneseq
        %v544 = vshrl.u32 %v543, 7
        %v545 = vsub.s32 %v542, %v544
        %v546 = vrot.slane %v538, %v545
        %v548 = vunpack.c.l.s4 1934713408
        %v549 = vunpack.c.0.s8 %v548
        %v550 = vlaneseq
        %v551 = vshrl.u32 %v550, 7
        %v552 = vsub.s32 %v549, %v551
        %v553 = vrot.slane %v539, %v552
        %v554 = vcombine.low %v489, %v505
        %v555 = vcombine.high %v489, %v505
        %v557 = vunpack.c.l.s4 1934713408
        %v558 = vunpack.c.0.s8 %v557
        %v559 = vlaneseq
        %v560 = vshrl.u32 %v559, 7
        %v561 = vsub.s32 %v558, %v560
        %v562 = vrot.slane %v554, %v561
        %v564 = vunpack.c.l.s4 1934713408
        %v565 = vunpack.c.0.s8 %v564
        %v566 = vlaneseq
        %v567 = vshrl.u32 %v566, 7
        %v568 = vsub.s32 %v565, %v567
        %v569 = vrot.slane %v555, %v568
        %v570 = vcombine.low %v514, %v530
        %v571 = vcombine.high %v514, %v530
        %v573 = vunpack.c.l.s4 1934713408
        %v574 = vunpack.c.0.s8 %v573
        %v575 = vlaneseq
        %v576 = vshrl.u32 %v575, 7
        %v577 = vsub.s32 %v574, %v576
        %v578 = vrot.slane %v570, %v577
        %v580 = vunpack.c.l.s4 1934713408
        %v581 = vunpack.c.0.s8 %v580
        %v582 = vlaneseq
        %v583 = vshrl.u32 %v582, 7
        %v584 = vsub.s32 %v581, %v583
        %v585 = vrot.slane %v571, %v584
        %v586 = vcombine.low %v521, %v537
        %v587 = vcombine.high %v521, %v537
        %v589 = vunpack.c.l.s4 1934713408
        %v590 = vunpack.c.0.s8 %v589
        %v591 = vlaneseq
        %v592 = vshrl.u32 %v591, 7
        %v593 = vsub.s32 %v590, %v592
        %v594 = vrot.slane %v586, %v593
        %v596 = vunpack.c.l.s4 1934713408
        %v597 = vunpack.c.0.s8 %v596
        %v598 = vlaneseq
        %v599 = vshrl.u32 %v598, 7
        %v600 = vsub.s32 %v597, %v599
        %v601 = vrot.slane %v587, %v600
        %v602 = vcombine.low %v546, %v578
        %v603 = vcombine.high %v546, %v578
        %v604 = vcombine.low %v553, %v585
        %v605 = vcombine.high %v553, %v585
        %v606 = vcombine.low %v562, %v594
        %v607 = vcombine.high %v562, %v594
        %v608 = vcombine.low %v569, %v601
        %v609 = vcombine.high %v569, %v601
        %v610 = vcombine.low %v330, %v346
        %v611 = vcombine.high %v330, %v346
        %v613 = vunpack.c.l.s4 1983009808
        %v614 = vunpack.c.0.s8 %v613
        %v615 = vlaneseq
        %v616 = vshrl.u32 %v615, 7
        %v617 = vsub.s32 %v614, %v616
        %v618 = vrot.slane %v610, %v617
        %v620 = vunpack.c.l.s4 1983009808
        %v621 = vunpack.c.0.s8 %v620
        %v622 = vlaneseq
        %v623 = vshrl.u32 %v622, 7
        %v624 = vsub.s32 %v621, %v623
        %v625 = vrot.slane %v611, %v624
        %v626 = vcombine.low %v338, %v354
        %v627 = vcombine.high %v338, %v354
        %v629 = vunpack.c.l.s4 1983009808
        %v630 = vunpack.c.0.s8 %v629
        %v631 = vlaneseq
        %v632 = vshrl.u32 %v631, 7
        %v633 = vsub.s32 %v630, %v632
        %v634 = vrot.slane %v626, %v633
        %v636 = vunpack.c.l.s4 1983009808
        %v637 = vunpack.c.0.s8 %v636
        %v638 = vlaneseq
        %v639 = vshrl.u32 %v638, 7
        %v640 = vsub.s32 %v637, %v639
        %v641 = vrot.slane %v627, %v640
        %v642 = vcombine.low %v362, %v378
        %v643 = vcombine.high %v362, %v378
        %v645 = vunpack.c.l.s4 1983009808
        %v646 = vunpack.c.0.s8 %v645
        %v647 = vlaneseq
        %v648 = vshrl.u32 %v647, 7
        %v649 = vsub.s32 %v646, %v648
        %v650 = vrot.slane %v642, %v649
        %v652 = vunpack.c.l.s4 1983009808
        %v653 = vunpack.c.0.s8 %v652
        %v654 = vlaneseq
        %v655 = vshrl.u32 %v654, 7
        %v656 = vsub.s32 %v653, %v655
        %v657 = vrot.slane %v643, %v656
        %v658 = vcombine.low %v370, %v386
        %v659 = vcombine.high %v370, %v386
        %v661 = vunpack.c.l.s4 1983009808
        %v662 = vunpack.c.0.s8 %v661
        %v663 = vlaneseq
        %v664 = vshrl.u32 %v663, 7
        %v665 = vsub.s32 %v662, %v664
        %v666 = vrot.slane %v658, %v665
        %v668 = vunpack.c.l.s4 1983009808
        %v669 = vunpack.c.0.s8 %v668
        %v670 = vlaneseq
        %v671 = vshrl.u32 %v670, 7
        %v672 = vsub.s32 %v669, %v671
        %v673 = vrot.slane %v659, %v672
        %v674 = vcombine.low %v618, %v634
        %v675 = vcombine.high %v618, %v634
        %v677 = vunpack.c.l.s4 1934713408
        %v678 = vunpack.c.0.s8 %v677
        %v679 = vlaneseq
        %v680 = vshrl.u32 %v679, 7
        %v681 = vsub.s32 %v678, %v680
        %v682 = vrot.slane %v674, %v681
        %v684 = vunpack.c.l.s4 1934713408
        %v685 = vunpack.c.0.s8 %v684
        %v686 = vlaneseq
        %v687 = vshrl.u32 %v686, 7
        %v688 = vsub.s32 %v685, %v687
        %v689 = vrot.slane %v675, %v688
        %v690 = vcombine.low %v625, %v641
        %v691 = vcombine.high %v625, %v641
        %v693 = vunpack.c.l.s4 1934713408
        %v694 = vunpack.c.0.s8 %v693
        %v695 = vlaneseq
        %v696 = vshrl.u32 %v695, 7
        %v697 = vsub.s32 %v694, %v696
        %v698 = vrot.slane %v690, %v697
        %v700 = vunpack.c.l.s4 1934713408
        %v701 = vunpack.c.0.s8 %v700
        %v702 = vlaneseq
        %v703 = vshrl.u32 %v702, 7
        %v704 = vsub.s32 %v701, %v703
        %v705 = vrot.slane %v691, %v704
        %v706 = vcombine.low %v650, %v666
        %v707 = vcombine.high %v650, %v666
        %v709 = vunpack.c.l.s4 1934713408
        %v710 = vunpack.c.0.s8 %v709
        %v711 = vlaneseq
        %v712 = vshrl.u32 %v711, 7
        %v713 = vsub.s32 %v710, %v712
        %v714 = vrot.slane %v706, %v713
        %v716 = vunpack.c.l.s4 1934713408
        %v717 = vunpack.c.0.s8 %v716
        %v718 = vlaneseq
        %v719 = vshrl.u32 %v718, 7
        %v720 = vsub.s32 %v717, %v719
        %v721 = vrot.slane %v707, %v720
        %v722 = vcombine.low %v657, %v673
        %v723 = vcombine.high %v657, %v673
        %v725 = vunpack.c.l.s4 1934713408
        %v726 = vunpack.c.0.s8 %v725
        %v727 = vlaneseq
        %v728 = vshrl.u32 %v727, 7
        %v729 = vsub.s32 %v726, %v728
        %v730 = vrot.slane %v722, %v729
        %v732 = vunpack.c.l.s4 1934713408
        %v733 = vunpack.c.0.s8 %v732
        %v734 = vlaneseq
        %v735 = vshrl.u32 %v734, 7
        %v736 = vsub.s32 %v733, %v735
        %v737 = vrot.slane %v723, %v736
        %v738 = vcombine.low %v682, %v714
        %v739 = vcombine.high %v682, %v714
        %v740 = vcombine.low %v689, %v721
        %v741 = vcombine.high %v689, %v721
        %v742 = vcombine.low %v698, %v730
        %v743 = vcombine.high %v698, %v730
        %v744 = vcombine.low %v705, %v737
        %v745 = vcombine.high %v705, %v737
        %v746 = vcombine.low %v390, %v406
        %v747 = vcombine.high %v390, %v406
        %v749 = vunpack.c.l.s4 1983009808
        %v750 = vunpack.c.0.s8 %v749
        %v751 = vlaneseq
        %v752 = vshrl.u32 %v751, 7
        %v753 = vsub.s32 %v750, %v752
        %v754 = vrot.slane %v746, %v753
        %v756 = vunpack.c.l.s4 1983009808
        %v757 = vunpack.c.0.s8 %v756
        %v758 = vlaneseq
        %v759 = vshrl.u32 %v758, 7
        %v760 = vsub.s32 %v757, %v759
        %v761 = vrot.slane %v747, %v760
        %v762 = vcombine.low %v398, %v414
        %v763 = vcombine.high %v398, %v414
        %v765 = vunpack.c.l.s4 1983009808
        %v766 = vunpack.c.0.s8 %v765
        %v767 = vlaneseq
        %v768 = vshrl.u32 %v767, 7
        %v769 = vsub.s32 %v766, %v768
        %v770 = vrot.slane %v762, %v769
        %v772 = vunpack.c.l.s4 1983009808
        %v773 = vunpack.c.0.s8 %v772
        %v774 = vlaneseq
        %v775 = vshrl.u32 %v774, 7
        %v776 = vsub.s32 %v773, %v775
        %v777 = vrot.slane %v763, %v776
        %v778 = vcombine.low %v422, %v438
        %v779 = vcombine.high %v422, %v438
        %v781 = vunpack.c.l.s4 1983009808
        %v782 = vunpack.c.0.s8 %v781
        %v783 = vlaneseq
        %v784 = vshrl.u32 %v783, 7
        %v785 = vsub.s32 %v782, %v784
        %v786 = vrot.slane %v778, %v785
        %v788 = vunpack.c.l.s4 1983009808
        %v789 = vunpack.c.0.s8 %v788
        %v790 = vlaneseq
        %v791 = vshrl.u32 %v790, 7
        %v792 = vsub.s32 %v789, %v791
        %v793 = vrot.slane %v779, %v792
        %v794 = vcombine.low %v430, %v446
        %v795 = vcombine.high %v430, %v446
        %v797 = vunpack.c.l.s4 1983009808
        %v798 = vunpack.c.0.s8 %v797
        %v799 = vlaneseq
        %v800 = vshrl.u32 %v799, 7
        %v801 = vsub.s32 %v798, %v800
        %v802 = vrot.slane %v794, %v801
        %v804 = vunpack.c.l.s4 1983009808
        %v805 = vunpack.c.0.s8 %v804
        %v806 = vlaneseq
        %v807 = vshrl.u32 %v806, 7
        %v808 = vsub.s32 %v805, %v807
        %v809 = vrot.slane %v795, %v808
        %v810 = vcombine.low %v754, %v770
        %v811 = vcombine.high %v754, %v770
        %v813 = vunpack.c.l.s4 1934713408
        %v814 = vunpack.c.0.s8 %v813
        %v815 = vlaneseq
        %v816 = vshrl.u32 %v815, 7
        %v817 = vsub.s32 %v814, %v816
        %v818 = vrot.slane %v810, %v817
        %v820 = vunpack.c.l.s4 1934713408
        %v821 = vunpack.c.0.s8 %v820
        %v822 = vlaneseq
        %v823 = vshrl.u32 %v822, 7
        %v824 = vsub.s32 %v821, %v823
        %v825 = vrot.slane %v811, %v824
        %v826 = vcombine.low %v761, %v777
        %v827 = vcombine.high %v761, %v777
        %v829 = vunpack.c.l.s4 1934713408
        %v830 = vunpack.c.0.s8 %v829
        %v831 = vlaneseq
        %v832 = vshrl.u32 %v831, 7
        %v833 = vsub.s32 %v830, %v832
        %v834 = vrot.slane %v826, %v833
        %v836 = vunpack.c.l.s4 1934713408
        %v837 = vunpack.c.0.s8 %v836
        %v838 = vlaneseq
        %v839 = vshrl.u32 %v838, 7
        %v840 = vsub.s32 %v837, %v839
        %v841 = vrot.slane %v827, %v840
        %v842 = vcombine.low %v786, %v802
        %v843 = vcombine.high %v786, %v802
        %v845 = vunpack.c.l.s4 1934713408
        %v846 = vunpack.c.0.s8 %v845
        %v847 = vlaneseq
        %v848 = vshrl.u32 %v847, 7
        %v849 = vsub.s32 %v846, %v848
        %v850 = vrot.slane %v842, %v849
        %v852 = vunpack.c.l.s4 1934713408
        %v853 = vunpack.c.0.s8 %v852
        %v854 = vlaneseq
        %v855 = vshrl.u32 %v854, 7
        %v856 = vsub.s32 %v853, %v855
        %v857 = vrot.slane %v843, %v856
        %v858 = vcombine.low %v793, %v809
        %v859 = vcombine.high %v793, %v809
        %v861 = vunpack.c.l.s4 1934713408
        %v862 = vunpack.c.0.s8 %v861
        %v863 = vlaneseq
        %v864 = vshrl.u32 %v863, 7
        %v865 = vsub.s32 %v862, %v864
        %v866 = vrot.slane %v858, %v865
        %v868 = vunpack.c.l.s4 1934713408
        %v869 = vunpack.c.0.s8 %v868
        %v870 = vlaneseq
        %v871 = vshrl.u32 %v870, 7
        %v872 = vsub.s32 %v869, %v871
        %v873 = vrot.slane %v859, %v872
        %v874 = vcombine.low %v818, %v850
        %v875 = vcombine.high %v818, %v850
        %v876 = vcombine.low %v825, %v857
        %v877 = vcombine.high %v825, %v857
        %v878 = vcombine.low %v834, %v866
        %v879 = vcombine.high %v834, %v866
        %v880 = vcombine.low %v841, %v873
        %v881 = vcombine.high %v841, %v873
        %v882 = vcombine.low %v394, %v410
        %v883 = vcombine.high %v394, %v410
        %v885 = vunpack.c.l.s4 1983009808
        %v886 = vunpack.c.0.s8 %v885
        %v887 = vlaneseq
        %v888 = vshrl.u32 %v887, 7
        %v889 = vsub.s32 %v886, %v888
        %v890 = vrot.slane %v882, %v889
        %v892 = vunpack.c.l.s4 1983009808
        %v893 = vunpack.c.0.s8 %v892
        %v894 = vlaneseq
        %v895 = vshrl.u32 %v894, 7
        %v896 = vsub.s32 %v893, %v895
        %v897 = vrot.slane %v883, %v896
        %v898 = vcombine.low %v402, %v418
        %v899 = vcombine.high %v402, %v418
        %v901 = vunpack.c.l.s4 1983009808
        %v902 = vunpack.c.0.s8 %v901
        %v903 = vlaneseq
        %v904 = vshrl.u32 %v903, 7
        %v905 = vsub.s32 %v902, %v904
        %v906 = vrot.slane %v898, %v905
        %v908 = vunpack.c.l.s4 1983009808
        %v909 = vunpack.c.0.s8 %v908
        %v910 = vlaneseq
        %v911 = vshrl.u32 %v910, 7
        %v912 = vsub.s32 %v909, %v911
        %v913 = vrot.slane %v899, %v912
        %v914 = vcombine.low %v426, %v442
        %v915 = vcombine.high %v426, %v442
        %v917 = vunpack.c.l.s4 1983009808
        %v918 = vunpack.c.0.s8 %v917
        %v919 = vlaneseq
        %v920 = vshrl.u32 %v919, 7
        %v921 = vsub.s32 %v918, %v920
        %v922 = vrot.slane %v914, %v921
        %v924 = vunpack.c.l.s4 1983009808
        %v925 = vunpack.c.0.s8 %v924
        %v926 = vlaneseq
        %v927 = vshrl.u32 %v926, 7
        %v928 = vsub.s32 %v925, %v927
        %v929 = vrot.slane %v915, %v928
        %v930 = vcombine.low %v434, %v450
        %v931 = vcombine.high %v434, %v450
        %v933 = vunpack.c.l.s4 1983009808
        %v934 = vunpack.c.0.s8 %v933
        %v935 = vlaneseq
        %v936 = vshrl.u32 %v935, 7
        %v937 = vsub.s32 %v934, %v936
        %v938 = vrot.slane %v930, %v937
        %v940 = vunpack.c.l.s4 1983009808
        %v941 = vunpack.c.0.s8 %v940
        %v942 = vlaneseq
        %v943 = vshrl.u32 %v942, 7
        %v944 = vsub.s32 %v941, %v943
        %v945 = vrot.slane %v931, %v944
        %v946 = vcombine.low %v890, %v906
        %v947 = vcombine.high %v890, %v906
        %v949 = vunpack.c.l.s4 1934713408
        %v950 = vunpack.c.0.s8 %v949
        %v951 = vlaneseq
        %v952 = vshrl.u32 %v951, 7
        %v953 = vsub.s32 %v950, %v952
        %v954 = vrot.slane %v946, %v953
        %v956 = vunpack.c.l.s4 1934713408
        %v957 = vunpack.c.0.s8 %v956
        %v958 = vlaneseq
        %v959 = vshrl.u32 %v958, 7
        %v960 = vsub.s32 %v957, %v959
        %v961 = vrot.slane %v947, %v960
        %v962 = vcombine.low %v897, %v913
        %v963 = vcombine.high %v897, %v913
        %v965 = vunpack.c.l.s4 1934713408
        %v966 = vunpack.c.0.s8 %v965
        %v967 = vlaneseq
        %v968 = vshrl.u32 %v967, 7
        %v969 = vsub.s32 %v966, %v968
        %v970 = vrot.slane %v962, %v969
        %v972 = vunpack.c.l.s4 1934713408
        %v973 = vunpack.c.0.s8 %v972
        %v974 = vlaneseq
        %v975 = vshrl.u32 %v974, 7
        %v976 = vsub.s32 %v973, %v975
        %v977 = vrot.slane %v963, %v976
        %v978 = vcombine.low %v922, %v938
        %v979 = vcombine.high %v922, %v938
        %v981 = vunpack.c.l.s4 1934713408
        %v982 = vunpack.c.0.s8 %v981
        %v983 = vlaneseq
        %v984 = vshrl.u32 %v983, 7
        %v985 = vsub.s32 %v982, %v984
        %v986 = vrot.slane %v978, %v985
        %v988 = vunpack.c.l.s4 1934713408
        %v989 = vunpack.c.0.s8 %v988
        %v990 = vlaneseq
        %v991 = vshrl.u32 %v990, 7
        %v992 = vsub.s32 %v989, %v991
        %v993 = vrot.slane %v979, %v992
        %v994 = vcombine.low %v929, %v945
        %v995 = vcombine.high %v929, %v945
        %v997 = vunpack.c.l.s4 1934713408
        %v998 = vunpack.c.0.s8 %v997
        %v999 = vlaneseq
        %v1000 = vshrl.u32 %v999, 7
        %v1001 = vsub.s32 %v998, %v1000
        %v1002 = vrot.slane %v994, %v1001
        %v1004 = vunpack.c.l.s4 1934713408
        %v1005 = vunpack.c.0.s8 %v1004
        %v1006 = vlaneseq
        %v1007 = vshrl.u32 %v1006, 7
        %v1008 = vsub.s32 %v1005, %v1007
        %v1009 = vrot.slane %v995, %v1008
        %v1010 = vcombine.low %v954, %v986
        %v1011 = vcombine.high %v954, %v986
        %v1012 = vcombine.low %v961, %v993
        %v1013 = vcombine.high %v961, %v993
        %v1014 = vcombine.low %v970, %v1002
        %v1015 = vcombine.high %v970, %v1002
        %v1016 = vcombine.low %v977, %v1009
        %v1017 = vcombine.high %v977, %v1009
        %v1018 = vcombine.high %v454, %v469
        %v1020 = vunpack.c.l.s4 1983009808
        %v1021 = vunpack.c.0.s8 %v1020
        %v1022 = vlaneseq
        %v1023 = vshrl.u32 %v1022, 7
        %v1024 = vsub.s32 %v1021, %v1023
        %v1025 = vrot.slane %v454, %v1024
        %v1027 = vunpack.c.l.s4 1983009808
        %v1028 = vunpack.c.0.s8 %v1027
        %v1029 = vlaneseq
        %v1030 = vshrl.u32 %v1029, 7
        %v1031 = vsub.s32 %v1028, %v1030
        %v1032 = vrot.slane %v1018, %v1031
        %v1033 = vcombine.high %v462, %v469
        %v1035 = vunpack.c.l.s4 1983009808
        %v1036 = vunpack.c.0.s8 %v1035
        %v1037 = vlaneseq
        %v1038 = vshrl.u32 %v1037, 7
        %v1039 = vsub.s32 %v1036, %v1038
        %v1040 = vrot.slane %v462, %v1039
        %v1042 = vunpack.c.l.s4 1983009808
        %v1043 = vunpack.c.0.s8 %v1042
        %v1044 = vlaneseq
        %v1045 = vshrl.u32 %v1044, 7
        %v1046 = vsub.s32 %v1043, %v1045
        %v1047 = vrot.slane %v1033, %v1046
        %v1048 = vcombine.low %v1025, %v1040
        %v1049 = vcombine.high %v1025, %v1040
        %v1051 = vunpack.c.l.s4 1934713408
        %v1052 = vunpack.c.0.s8 %v1051
        %v1053 = vlaneseq
        %v1054 = vshrl.u32 %v1053, 7
        %v1055 = vsub.s32 %v1052, %v1054
        %v1056 = vrot.slane %v1048, %v1055
        %v1058 = vunpack.c.l.s4 1934713408
        %v1059 = vunpack.c.0.s8 %v1058
        %v1060 = vlaneseq
        %v1061 = vshrl.u32 %v1060, 7
        %v1062 = vsub.s32 %v1059, %v1061
        %v1063 = vrot.slane %v1049, %v1062
        %v1064 = vcombine.low %v1032, %v1047
        %v1065 = vcombine.high %v1032, %v1047
        %v1067 = vunpack.c.l.s4 1934713408
        %v1068 = vunpack.c.0.s8 %v1067
        %v1069 = vlaneseq
        %v1070 = vshrl.u32 %v1069, 7
        %v1071 = vsub.s32 %v1068, %v1070
        %v1072 = vrot.slane %v1064, %v1071
        %v1074 = vunpack.c.l.s4 1934713408
        %v1075 = vunpack.c.0.s8 %v1074
        %v1076 = vlaneseq
        %v1077 = vshrl.u32 %v1076, 7
        %v1078 = vsub.s32 %v1075, %v1077
        %v1079 = vrot.slane %v1065, %v1078
        %v1080 = vcombine.high %v1056, 0
        %v1081 = vcombine.high %v1063, 0
        %v1082 = vcombine.high %v1072, 0
        %v1083 = vcombine.high %v1079, 0
        %v1084 = vcombine.high %v458, %v472
        %v1086 = vunpack.c.l.s4 1983009808
        %v1087 = vunpack.c.0.s8 %v1086
        %v1088 = vlaneseq
        %v1089 = vshrl.u32 %v1088, 7
        %v1090 = vsub.s32 %v1087, %v1089
        %v1091 = vrot.slane %v458, %v1090
        %v1093 = vunpack.c.l.s4 1983009808
        %v1094 = vunpack.c.0.s8 %v1093
        %v1095 = vlaneseq
        %v1096 = vshrl.u32 %v1095, 7
        %v1097 = vsub.s32 %v1094, %v1096
        %v1098 = vrot.slane %v1084, %v1097
        %v1099 = vcombine.high %v466, %v472
        %v1101 = vunpack.c.l.s4 1983009808
        %v1102 = vunpack.c.0.s8 %v1101
        %v1103 = vlaneseq
        %v1104 = vshrl.u32 %v1103, 7
        %v1105 = vsub.s32 %v1102, %v1104
        %v1106 = vrot.slane %v466, %v1105
        %v1108 = vunpack.c.l.s4 1983009808
        %v1109 = vunpack.c.0.s8 %v1108
        %v1110 = vlaneseq
        %v1111 = vshrl.u32 %v1110, 7
        %v1112 = vsub.s32 %v1109, %v1111
        %v1113 = vrot.slane %v1099, %v1112
        %v1114 = vcombine.low %v1091, %v1106
        %v1115 = vcombine.high %v1091, %v1106
        %v1117 = vunpack.c.l.s4 1934713408
        %v1118 = vunpack.c.0.s8 %v1117
        %v1119 = vlaneseq
        %v1120 = vshrl.u32 %v1119, 7
        %v1121 = vsub.s32 %v1118, %v1120
        %v1122 = vrot.slane %v1114, %v1121
        %v1124 = vunpack.c.l.s4 1934713408
        %v1125 = vunpack.c.0.s8 %v1124
        %v1126 = vlaneseq
        %v1127 = vshrl.u32 %v1126, 7
        %v1128 = vsub.s32 %v1125, %v1127
        %v1129 = vrot.slane %v1115, %v1128
        %v1130 = vcombine.low %v1098, %v1113
        %v1131 = vcombine.high %v1098, %v1113
        %v1133 = vunpack.c.l.s4 1934713408
        %v1134 = vunpack.c.0.s8 %v1133
        %v1135 = vlaneseq
        %v1136 = vshrl.u32 %v1135, 7
        %v1137 = vsub.s32 %v1134, %v1136
        %v1138 = vrot.slane %v1130, %v1137
        %v1140 = vunpack.c.l.s4 1934713408
        %v1141 = vunpack.c.0.s8 %v1140
        %v1142 = vlaneseq
        %v1143 = vshrl.u32 %v1142, 7
        %v1144 = vsub.s32 %v1141, %v1143
        %v1145 = vrot.slane %v1131, %v1144
        %v1146 = vcombine.high %v1122, 0
        %v1147 = vcombine.high %v1129, 0
        %v1148 = vcombine.high %v1138, 0
        %v1149 = vcombine.high %v1145, 0
        %1153 = vrot.lane.b32.xlu0 %v738, 16
        %v1154 = vpop.permute.xlu0 %1153
        %1155 = vrot.lane.b32.xlu0 %v1010, 16
        %v1156 = vpop.permute.xlu0 %1155
        %1157 = vrot.lane.b32.xlu0 %v1122, 16
        %v1158 = vpop.permute.xlu0 %1157
        %1162 = vrot.lane.b32.xlu0 %v603, 32
        %v1163 = vpop.permute.xlu0 %1162
        %1164 = vrot.lane.b32.xlu0 %v875, 32
        %v1165 = vpop.permute.xlu0 %1164
        %1166 = vrot.lane.b32.xlu0 %v1080, 32
        %v1167 = vpop.permute.xlu0 %1166
        %1171 = vrot.lane.b32.xlu0 %v739, 48
        %v1172 = vpop.permute.xlu0 %1171
        %1173 = vrot.lane.b32.xlu0 %v1011, 48
        %v1174 = vpop.permute.xlu0 %1173
        %1175 = vrot.lane.b32.xlu0 %v1146, 48
        %v1176 = vpop.permute.xlu0 %1175
        %1180 = vrot.lane.b32.xlu0 %v604, 64
        %v1181 = vpop.permute.xlu0 %1180
        %1182 = vrot.lane.b32.xlu0 %v876, 64
        %v1183 = vpop.permute.xlu0 %1182
        %1184 = vrot.lane.b32.xlu0 %v1063, 64
        %v1185 = vpop.permute.xlu0 %1184
        %1189 = vrot.lane.b32.xlu0 %v740, 80
        %v1190 = vpop.permute.xlu0 %1189
        %1191 = vrot.lane.b32.xlu0 %v1012, 80
        %v1192 = vpop.permute.xlu0 %1191
        %1193 = vrot.lane.b32.xlu0 %v1129, 80
        %v1194 = vpop.permute.xlu0 %1193
        %1198 = vrot.lane.b32.xlu0 %v605, 96
        %v1199 = vpop.permute.xlu0 %1198
        %1200 = vrot.lane.b32.xlu0 %v877, 96
        %v1201 = vpop.permute.xlu0 %1200
        %1202 = vrot.lane.b32.xlu0 %v1081, 96
        %v1203 = vpop.permute.xlu0 %1202
        %1207 = vrot.lane.b32.xlu0 %v741, 112
        %v1208 = vpop.permute.xlu0 %1207
        %1209 = vrot.lane.b32.xlu0 %v1013, 112
        %v1210 = vpop.permute.xlu0 %1209
        %1211 = vrot.lane.b32.xlu0 %v1147, 112
        %v1212 = vpop.permute.xlu0 %1211
        %1216 = vrot.lane.b32.xlu0 %v742, 16
        %v1217 = vpop.permute.xlu0 %1216
        %1218 = vrot.lane.b32.xlu0 %v1014, 16
        %v1219 = vpop.permute.xlu0 %1218
        %1220 = vrot.lane.b32.xlu0 %v1138, 16
        %v1221 = vpop.permute.xlu0 %1220
        %1225 = vrot.lane.b32.xlu0 %v607, 32
        %v1226 = vpop.permute.xlu0 %1225
        %1227 = vrot.lane.b32.xlu0 %v879, 32
        %v1228 = vpop.permute.xlu0 %1227
        %1229 = vrot.lane.b32.xlu0 %v1082, 32
        %v1230 = vpop.permute.xlu0 %1229
        %1234 = vrot.lane.b32.xlu0 %v743, 48
        %v1235 = vpop.permute.xlu0 %1234
        %1236 = vrot.lane.b32.xlu0 %v1015, 48
        %v1237 = vpop.permute.xlu0 %1236
        %1238 = vrot.lane.b32.xlu0 %v1148, 48
        %v1239 = vpop.permute.xlu0 %1238
        %1243 = vrot.lane.b32.xlu0 %v608, 64
        %v1244 = vpop.permute.xlu0 %1243
        %1245 = vrot.lane.b32.xlu0 %v880, 64
        %v1246 = vpop.permute.xlu0 %1245
        %1247 = vrot.lane.b32.xlu0 %v1079, 64
        %v1248 = vpop.permute.xlu0 %1247
        %1252 = vrot.lane.b32.xlu0 %v744, 80
        %v1253 = vpop.permute.xlu0 %1252
        %1254 = vrot.lane.b32.xlu0 %v1016, 80
        %v1255 = vpop.permute.xlu0 %1254
        %1256 = vrot.lane.b32.xlu0 %v1145, 80
        %v1257 = vpop.permute.xlu0 %1256
        %1261 = vrot.lane.b32.xlu0 %v609, 96
        %v1262 = vpop.permute.xlu0 %1261
        %1263 = vrot.lane.b32.xlu0 %v881, 96
        %v1264 = vpop.permute.xlu0 %1263
        %1265 = vrot.lane.b32.xlu0 %v1083, 96
        %v1266 = vpop.permute.xlu0 %1265
        %1270 = vrot.lane.b32.xlu0 %v745, 112
        %v1271 = vpop.permute.xlu0 %1270
        %1272 = vrot.lane.b32.xlu0 %v1017, 112
        %v1273 = vpop.permute.xlu0 %1272
        %1274 = vrot.lane.b32.xlu0 %v1149, 112
        %v1275 = vpop.permute.xlu0 %1274
        %vm1276 = vcmask 130048
        %v1279 = vsel %vm1276, %v602, %v1154
        %v1282 = vsel %vm1276, %v874, %v1156
        %v1285 = vsel %vm1276, %v1056, %v1158
        %vm1286 = vcmask 261120
        %v1288 = vsel %vm1286, %v1279, %v1163
        %v1290 = vsel %vm1286, %v1282, %v1165
        %v1292 = vsel %vm1286, %v1285, %v1167
        %vm1293 = vcmask 392192
        %v1295 = vsel %vm1293, %v1288, %v1172
        %v1297 = vsel %vm1293, %v1290, %v1174
        %v1299 = vsel %vm1293, %v1292, %v1176
        %vm1300 = vcmask 523264
        %v1302 = vsel %vm1300, %v1295, %v1181
        %v1304 = vsel %vm1300, %v1297, %v1183
        %v1306 = vsel %vm1300, %v1299, %v1185
        %vm1307 = vcmask 654336
        %v1309 = vsel %vm1307, %v1302, %v1190
        %v1311 = vsel %vm1307, %v1304, %v1192
        %v1313 = vsel %vm1307, %v1306, %v1194
        %vm1314 = vcmask 785408
        %v1316 = vsel %vm1314, %v1309, %v1199
        %v1318 = vsel %vm1314, %v1311, %v1201
        %v1320 = vsel %vm1314, %v1313, %v1203
        %vm1321 = vcmask 916480
        %v1323 = vsel %vm1321, %v1316, %v1208
        %v1326 = vsel %vm1321, %v1318, %v1210
        %v1329 = vsel %vm1321, %v1320, %v1212
        %v1332 = vsel %vm1276, %v606, %v1217
        %v1335 = vsel %vm1276, %v878, %v1219
        %v1338 = vsel %vm1276, %v1072, %v1221
        %v1340 = vsel %vm1286, %v1332, %v1226
        %v1342 = vsel %vm1286, %v1335, %v1228
        %v1344 = vsel %vm1286, %v1338, %v1230
        %v1346 = vsel %vm1293, %v1340, %v1235
        %v1348 = vsel %vm1293, %v1342, %v1237
        %v1350 = vsel %vm1293, %v1344, %v1239
        %v1352 = vsel %vm1300, %v1346, %v1244
        %v1354 = vsel %vm1300, %v1348, %v1246
        %v1356 = vsel %vm1300, %v1350, %v1248
        %v1358 = vsel %vm1307, %v1352, %v1253
        %v1360 = vsel %vm1307, %v1354, %v1255
        %v1362 = vsel %vm1307, %v1356, %v1257
        %v1364 = vsel %vm1314, %v1358, %v1262
        %v1366 = vsel %vm1314, %v1360, %v1264
        %v1368 = vsel %vm1314, %v1362, %v1266
        %v1370 = vsel %vm1321, %v1364, %v1271
        %v1373 = vsel %vm1321, %v1366, %v1273
        %v1376 = vsel %vm1321, %v1368, %v1275
        %v1377 = vld [vmem:[%s1] sm:$0xf]
        %v1378 = vld [vmem:[%s2] sm:$0xff]
        %1380 = vset.pattern.permute.xlu0 0
        %1381 = vperm.xlu0 %1380, %v1378
        %v1382 = vpop.permute.xlu0 %1381
        %vm1384 = vcmask 293888
        %v1386 = vsel %vm1384, %v1377, 0
        %vm1388 = vcmask 1041408
        %v1389 = vsel %vm1388, %v1329, 0
        %v1391 = vsel %vm1388, %v1376, 0
        %1393 = vmatprep.subr.bf16.mxu0 0
        %1394 = vmatpush1.bf16.msra.mxu0 0
        %1395 = vmatprep.subr.bf16.mxu0 0
        %1396 = vmatpush1.bf16.msra.mxu0 0
        %1397 = vmatprep.subr.bf16.mxu0 0
        %1398 = vmatpush1.bf16.msra.mxu0 0
        %1399 = vmatprep.subr.bf16.mxu0 0
        %1400 = vmatpush1.bf16.msra.mxu0 0
        %1401 = vmatprep.subr.bf16.mxu0 0
        %1402 = vmatpush1.bf16.msra.mxu0 0
        %1403 = vmatprep.subr.bf16.mxu0 %v1391
        %1404 = vmatpush1.bf16.msra.mxu0 %v1389
        %1405 = vmatprep.subr.bf16.mxu0 %v1373
        %1406 = vmatpush1.bf16.msra.mxu0 %v1326
        %1407 = vmatprep.subr.bf16.mxu0 %v1370
        %1408 = vmatpush1.bf16.msra.mxu0 %v1323
        %1409 = vmatprep.subr.bf16.mxu0 0
        %1410 = vmatpush2.bf16.msra.mxu0 0
        %1411 = vmatprep.subr.bf16.mxu0 0
        %1412 = vmatpush2.bf16.msra.mxu0 0
        %1413 = vmatprep.subr.bf16.mxu0 0
        %1414 = vmatpush2.bf16.msra.mxu0 0
        %1415 = vmatprep.subr.bf16.mxu0 0
        %1416 = vmatpush2.bf16.msra.mxu0 0
        %1417 = vmatprep.subr.bf16.mxu0 0
        %1418 = vmatpush2.bf16.msra.mxu0 0
        %1419 = vmatprep.subr.bf16.mxu0 0
        %1420 = vmatpush2.bf16.msra.mxu0 0
        %1421 = vmatprep.subr.bf16.mxu0 0
        %1422 = vmatpush2.bf16.msra.mxu0 0
        %1423 = vmatprep.subr.bf16.mxu0 0
        %1424 = vmatpush2.bf16.msra.mxu0 0
        %1425 = vmatprep.mubr.bf16.mxu0 0
        %1426 = vmatmul.mubr.bf16.gmra.mxu0 %v1386
        %v1427 = vpop.f32.mrf.mxu0
        %v1428 = vadd.f32 %v1382, %v1427
        %v1429 = vpop.f32.mrf.mxu0
        %v1430 = vadd.f32 %v1382, %v1429
        %v1431 = vpop.f32.mrf.mxu0
        %v1432 = vpop.f32.mrf.mxu0
        %1433 = vdwg.mxu0
        %1434 = vst [vmem:[%s208] sm:$0xff] %v1428
        %1435 = vst [vmem:[%s208 + $0x8] sm:$0xff] %v1430
        %v1436 = vadd.f32 %v1428, %v1430
        %1437 = vadd.xlane.f32.xlu0 %v1436
        %v1438 = vpop.xlane.xlu0 %1437
        %v1439 = vrot.slane %v1438, 4
        %v1440 = vadd.f32 %v1438, %v1439
        %v1441 = vrot.slane %v1440, 2
        %v1442 = vadd.f32 %v1440, %v1441
        %v1443 = vrot.slane %v1442, 1
        %v1444 = vadd.f32 %v1442, %v1443
        %s1445 = vtos %v1444
        %v1446 = vstv %s1445
        %v1447 = vmul.f32 %v1428, %v1428
        %v1448 = vmul.f32 %v1430, %v1430
        %v1449 = vadd.f32 %v1447, %v1448
        %1450 = vadd.xlane.f32.xlu0 %v1449
        %v1451 = vpop.xlane.xlu0 %1450
        %v1452 = vrot.slane %v1451, 4
        %v1453 = vadd.f32 %v1451, %v1452
        %v1454 = vrot.slane %v1453, 2
        %v1455 = vadd.f32 %v1453, %v1454
        %v1456 = vrot.slane %v1455, 1
        %v1457 = vadd.f32 %v1455, %v1456
        %s1458 = vtos %v1457
        %v1459 = vstv %s1458
        %vm1460 = vcmask 7168
        %v1461 = vsel %vm1460, %v1446, %v1459
        %p1462 = scmp.eq.s32.totalorder %s27, 0
        // Predicated region
        $region33: #{tpu_custom_call.1} parent=31 // pred_check
          %p1463 = pneg %p1462
        $region34: #{tpu_custom_call.1} parent=31 // pred_check_branch
          %1465 = sbr.rel (%p1463) target = $region36
        $region35: #{tpu_custom_call.1} parent=31 // pred_region
          %vm1466 = vcmask 8192
          %1467 = vst.msk [vmem:[%s214] sm:$0x1] %vm1466, 0.0
        $region36: #{tpu_custom_call.1} parent=31 // pred_fallthru
          _
        %v1468 = vld [vmem:[%s214] sm:$0x1]
        %v1469 = vadd.f32 %v1468, %v1461
        %vm1470 = vcmask 8192
        %1471 = vst.msk [vmem:[%s214] sm:$0x1] %vm1470, %v1469
        %s1472 = sand.u32 %s112, 1
        %s1473 = scalar_lea.sflag [#allocation3], %s1472
        %s1474 = sand.u32 %s112, 1
        %s1475 = smul.addr %s1474, 16
        %s1476 = scalar_lea.vmem [#allocation2], %s1475
        %s1477 = sand.u32 %s138, 1
        %s1478 = scalar_lea.sflag [#allocation5], %s1477
        %s1479 = sand.u32 %s138, 1
        %s1480 = scalar_lea.vmem [#allocation4], %s1479
        // Predicated region
        $region37: #{tpu_custom_call.1} parent=31 // pred_check
          %p1481 = pneg %p122
        $region38: #{tpu_custom_call.1} parent=31 // pred_check_branch
          %1483 = sbr.rel (%p1481) target = $region40
        $region39: #{tpu_custom_call.1} parent=31 // pred_region
          %s1484 = smul.u32 2, %s27
          %s1486 = ssub.s32 256, 256
          %1487 = vsyncadd %s1473, %s1486
          %s1488 = smul.addr %s26, 2
          %s1489 = sadd.s32 %s1484, %s1488
          %s1490 = smul.addr %s1489, 128
          %s1491 = scalar_lea.hbm %s3, %s1490
          %s1493 = sshll.u32 %s1476, 4
          %s1494 = int_to_ptr.vmem [resolvable:$true] %s1493
          %1496 = dma.vmem_to_hbm [thread:$0]  %s1494, 256, %s1491, %s1473
        $region40: #{tpu_custom_call.1} parent=31 // pred_fallthru
          _
        // Predicated region
        $region41: #{tpu_custom_call.1} parent=31 // pred_check
          %p1497 = pneg %p148
        $region42: #{tpu_custom_call.1} parent=31 // pred_check_branch
          %1499 = sbr.rel (%p1497) target = $region44
        $region43: #{tpu_custom_call.1} parent=31 // pred_region
          %s1501 = ssub.s32 16, 16
          %1502 = vsyncadd %s1478, %s1501
          %s1503 = smul.addr %s26, 16
          %s1504 = scalar_lea.hbm %s4, %s1503
          %s1506 = sshll.u32 %s1480, 4
          %s1507 = int_to_ptr.vmem [resolvable:$true] %s1506
          %1509 = dma.vmem_to_hbm [thread:$0]  %s1507, 16, %s1504, %s1478
        $region44: #{tpu_custom_call.1} parent=31 // pred_fallthru
          _
      $region32: #{tpu_custom_call.1} parent=5 // pred_fallthru
        _
      %p1510 = scmp.le.s32.totalorder 2, %s17
      // Predicated region
      $region45: #{tpu_custom_call.1} parent=5 // pred_check
        %p1511 = pneg %p1510
      $region46: #{tpu_custom_call.1} parent=5 // pred_check_branch
        %1513 = sbr.rel (%p1511) target = $region48
      $region47: #{tpu_custom_call.1} parent=5 // pred_region
        %s1514 = ssub.s32 %s17, 2
        // Predicated region
        $region49: #{tpu_custom_call.1} parent=47 // pred_check
          %p1515 = pneg %p128
        $region50: #{tpu_custom_call.1} parent=47 // pred_check_branch
          %1517 = sbr.rel (%p1515) target = $region52
        $region51: #{tpu_custom_call.1} parent=47 // pred_region
          %s1518 = sand.u32 %s113, 1
          %s1519 = scalar_lea.sflag [#allocation3], %s1518
          %s1520 = sand.u32 %s113, 1
          %s1521 = smul.addr %s1520, 16
          %s1522 = scalar_lea.vmem [#allocation2], %s1521
          %1523 = dma.done %s1519, 256
        $region52: #{tpu_custom_call.1} parent=47 // pred_fallthru
          _
        // Predicated region
        $region53: #{tpu_custom_call.1} parent=47 // pred_check
          %p1524 = pneg %p154
        $region54: #{tpu_custom_call.1} parent=47 // pred_check_branch
          %1526 = sbr.rel (%p1524) target = $region56
        $region55: #{tpu_custom_call.1} parent=47 // pred_region
          %s1527 = sand.u32 %s139, 1
          %s1528 = scalar_lea.sflag [#allocation5], %s1527
          %s1529 = sand.u32 %s139, 1
          %s1530 = scalar_lea.vmem [#allocation4], %s1529
          %1531 = dma.done %s1528, 16
        $region56: #{tpu_custom_call.1} parent=47 // pred_fallthru
          _
      $region48: #{tpu_custom_call.1} parent=5 // pred_fallthru
        _
    $region6: #{tpu_custom_call.1} parent=1 // loop_footer
      %s21 = sadd.s32 1, %s17
    $region7: #{tpu_custom_call.1} parent=1 // loop_footer_branch
      %16 = sbr.rel target = $region3
    $region8: #{tpu_custom_call.1} parent=1 // loop_exit
      _
    %1532 = vsyncpa [#allocation3], 1
    %s1533 = scalar_lea.sflag [#allocation3], 1
    %1534 = vsyncpa %s1533, 1
    %1535 = vsyncpa [#allocation5], 1
    %s1536 = scalar_lea.sflag [#allocation5], 1
    %1537 = vsyncpa %s1536, 1

</llo_original>
